<compile_context>
chip_gen: v7x
topology: tpu7x:2x2x1
jax: 0.10.0
libtpu: 0.0.40
codegen_flags: <defaults>
</compile_context>

<pallas_src>
import math

import jax
import jax.numpy as jnp
from jax.experimental import pallas as pl
from jax.experimental.pallas import tpu as pltpu

D_MODEL = 6
SEQ_LEN = 9
DROPOUT_P = 0.1  # dropout is identity in eval mode; see TODO below.

LANES = 128          # vreg lane width: minor axis of the flattened slab
MAX_ROW_TILE = 1024  # 1024 x 128 x 4B = 512 KiB per buffer -> fits double-buffered
                     # in the default scoped VMEM on v5e (16 MiB), v6e (32 MiB), v7x (32/64 MiB)


def _build_pe(seq_len: int, d_model: int) -> jnp.ndarray:
    """Deterministic sinusoidal positional-encoding buffer, shape (1, seq_len, d_model)."""
    pos = jnp.arange(seq_len, dtype=jnp.float32)[:, None]                     # (S, 1)
    div_term = jnp.exp(
        jnp.arange(0, d_model, 2, dtype=jnp.float32) * (-math.log(10000.0) / d_model)
    )                                                                          # (ceil(D/2),)
    n_sin = (d_model + 1) // 2
    n_cos = d_model // 2
    pe = jnp.zeros((seq_len, d_model), dtype=jnp.float32)
    pe = pe.at[:, 0::2].set(jnp.sin(pos * div_term[:n_sin]))
    pe = pe.at[:, 1::2].set(jnp.cos(pos * div_term[:n_cos]))
    return pe[None, :, :]                                                      # (1, S, D)


def _add_pe_kernel(x_ref, pe_ref, o_ref):
    # Lane-dense (row_tile, 128) tiles: plain elementwise add, unmasked full-width stores.
    o_ref[...] = x_ref[...] + pe_ref[...]
    # TODO(synk): nn.Dropout(p=0.1) is identity at inference; training-mode dropout
    # (pltpu.prng_seed + pltpu.prng_random_bits mask, scaled by 1/(1-p)) should be
    # fused here rather than run as a second pass.


def positional_encoding_forward(x: jnp.ndarray, pe: jnp.ndarray) -> jnp.ndarray:
    """x: (B, S, D), pe: (1, seq_len, D). Returns x + pe[:, :S, :] (eval-mode dropout)."""
    b, s, d = x.shape
    # Broadcast PE over batch and cast to the input dtype (tiny buffer at these sizes).
    pe_b = jnp.broadcast_to(pe[:, :s, :].astype(x.dtype), (b, s, d))

    # Flatten to a lane-dense (rows, 128) slab so the kernel's minor axis fills all lanes.
    n = b * s * d
    rows = pl.cdiv(n, LANES)
    if rows <= MAX_ROW_TILE:
        row_tile = rows                      # single block == full array -> always legal
    else:
        row_tile = MAX_ROW_TILE              # multiple of 8 -> satisfies (8,128) tiling
        rows = pl.cdiv(rows, row_tile) * row_tile
    npad = rows * LANES
    pad = npad - n
    x_flat = jnp.pad(x.reshape(-1), (0, pad)).reshape(rows, LANES)
    pe_flat = jnp.pad(pe_b.reshape(-1), (0, pad)).reshape(rows, LANES)

    out_flat = pl.pallas_call(
        _add_pe_kernel,
        out_shape=jax.ShapeDtypeStruct((rows, LANES), x.dtype),
        grid_spec=pltpu.PrefetchScalarGridSpec(
            num_scalar_prefetch=0,
            grid=(rows // row_tile,),
            in_specs=[
                pl.BlockSpec((row_tile, LANES), lambda i: (i, 0)),
                pl.BlockSpec((row_tile, LANES), lambda i: (i, 0)),
            ],
            out_specs=pl.BlockSpec((row_tile, LANES), lambda i: (i, 0)),
        ),
        compiler_params=pltpu.CompilerParams(dimension_semantics=("parallel",)),
    )(x_flat, pe_flat)

    return out_flat.reshape(-1)[:n].reshape(b, s, d)


if __name__ == "__main__":
    key = jax.random.PRNGKey(0)
    batch, seq = 2, 8  # seq <= SEQ_LEN, matching forward's pe[:, :x.shape[1], :]
    x = jax.random.normal(key, (batch, seq, D_MODEL), dtype=jnp.float32)

    pe = _build_pe(SEQ_LEN, D_MODEL)
    out = positional_encoding_forward(x, pe)
    out = jax.block_until_ready(out)

    # correctness check against plain-JAX reference (eval-mode dropout = identity)
    ref = x + pe[:, :seq, :]
    assert out.shape == (batch, seq, D_MODEL)
    assert jnp.allclose(out, ref, atol=1e-6), "mismatch vs reference"
    print("KERNEL_OK")
</pallas_src>

<mosaic_0001>
module attributes {stable_mosaic.version = 11 : i64} {
  func.func @_add_pe_kernel(%arg0: i32, %arg1: memref<1x128xf32, #tpu.memory_space<vmem>>, %arg2: memref<1x128xf32, #tpu.memory_space<vmem>>, %arg3: memref<1x128xf32, #tpu.memory_space<vmem>>) attributes {dimension_semantics = [#tpu.dimension_semantics<parallel>], iteration_bounds = array<i64: 1>, scalar_prefetch = 0 : i64, scratch_operands = 0 : i64, tpu.core_type = #tpu.core_type<tc>, window_params = [{transform_indices = @transform_0, window_bounds = array<i64: 1, 128>}, {transform_indices = @transform_1, window_bounds = array<i64: 1, 128>}, {transform_indices = @transform_2, window_bounds = array<i64: 1, 128>}]} {
    %c0 = arith.constant 0 : index
    %c0_0 = arith.constant 0 : index
    %0 = vector.load %arg1[%c0, %c0_0] : memref<1x128xf32, #tpu.memory_space<vmem>>, vector<1x128xf32>
    %c0_1 = arith.constant 0 : index
    %c0_2 = arith.constant 0 : index
    %1 = vector.load %arg2[%c0_1, %c0_2] : memref<1x128xf32, #tpu.memory_space<vmem>>, vector<1x128xf32>
    %2 = arith.addf %0, %1 : vector<1x128xf32>
    %c0_3 = arith.constant 0 : index
    %c0_4 = arith.constant 0 : index
    %3 = vector.load %arg3[%c0_3, %c0_4] : memref<1x128xf32, #tpu.memory_space<vmem>>, vector<1x128xf32>
    tpu.vector_store %arg3[%c0_3, %c0_4], %2 {strides = array<i32>} : memref<1x128xf32, #tpu.memory_space<vmem>>, vector<1x128xf32>,
    return
  }
  func.func @transform_0(%arg0: i32) -> (i32, i32) {
    %c0_i32 = arith.constant 0 : i32
    %c0_i32_0 = arith.constant 0 : i32
    return %arg0, %c0_i32 : i32, i32
  }
  func.func @transform_1(%arg0: i32) -> (i32, i32) {
    %c0_i32 = arith.constant 0 : i32
    %c0_i32_0 = arith.constant 0 : i32
    return %arg0, %c0_i32 : i32, i32
  }
  func.func @transform_2(%arg0: i32) -> (i32, i32) {
    %c0_i32 = arith.constant 0 : i32
    %c0_i32_0 = arith.constant 0 : i32
    return %arg0, %c0_i32 : i32, i32
  }
}

</mosaic_0001>

<llo_original>
// kernel: tpu_custom_call.1
$region0: #{tpu_custom_call.1}
  #allocation0 [shape = 'u32[]', space=smem, size = 0x4, offset = 0x4, fixed_abs, tag = 'smem constant byte address 0x4 - core index']
  #allocation1 [shape = 'u32[144,128]{1,0:T(1,128)}', space=vmem, size = 0x12000, scoped, tag = 'internal scratch']
  %s0 = inlined_call_operand.hbm [shape: f32[1,128], index: 0, kind: input, shape index: {}]
  %s1 = inlined_call_operand.vmem [shape: f32[1,128], index: 1, kind: input, shape index: {}]
  %s2 = inlined_call_operand.hbm [shape: f32[1,128], index: 2, kind: output, shape index: {}]
  %s3 = sld [smem:[#allocation0]]
  $region22: #{tpu_custom_call.1} parent=0
    _
  %s5 = ssub.s32 1, %s3
  %s6 = scalar_select 0, %s5, %s3
  $region1: #{tpu_custom_call.1} parent=0
    #allocation2 [shape = 'u8[512]{0}', space=vmem, size = 0x400, scoped, tag = 'input window, operand 0, single buffered']
    #allocation3 [shape = 's32[1]{0}', space=sflag, size = 0x4, scoped, tag = 'scoped memory for tpu_custom_call.1']
    #allocation4 [shape = 's32[1]{0}', space=sflag, size = 0x4, scoped, tag = 'scoped memory for tpu_custom_call.1']
    #allocation5 [shape = 'u8[512]{0}', space=vmem, size = 0x400, scoped, tag = 'output window, operand 0, single buffered']
    %7 = vsyncpa [#allocation3], 0
    %8 = vsyncpa [#allocation4], 0
    // Predicated region
    $region2: #{tpu_custom_call.1} parent=1 // pred_check
      _
    $region3: #{tpu_custom_call.1} parent=1 // pred_check_branch
      %10 = sbr.rel (0) target = $region5
    $region4: #{tpu_custom_call.1} parent=1 // pred_region
      %s12 = ssub.s32 16, 16
      %13 = vsyncadd [#allocation3], %s12
      %s15 = sshll.u32 [#allocation2], 4
      %s16 = int_to_ptr.vmem [resolvable:$true] %s15
      %18 = dma.hbm_to_vmem [thread:$0]  %s0, 16, %s16, [#allocation3]
    $region5: #{tpu_custom_call.1} parent=1 // pred_fallthru
      _
    // Predicated region
    $region6: #{tpu_custom_call.1} parent=1 // pred_check
      _
    $region7: #{tpu_custom_call.1} parent=1 // pred_check_branch
      %20 = sbr.rel (0) target = $region9
    $region8: #{tpu_custom_call.1} parent=1 // pred_region
      _
    $region9: #{tpu_custom_call.1} parent=1 // pred_fallthru
      _
    // Predicated region
    $region10: #{tpu_custom_call.1} parent=1 // pred_check
      _
    $region11: #{tpu_custom_call.1} parent=1 // pred_check_branch
      %22 = sbr.rel (0) target = $region13
    $region12: #{tpu_custom_call.1} parent=1 // pred_region
      %23 = dma.done [#allocation3], 16
    $region13: #{tpu_custom_call.1} parent=1 // pred_fallthru
      _
    %v24 = vld [vmem:[#allocation2] sm:$0x1]
    %v25 = vld [vmem:[%s1] sm:$0x1]
    %v26 = vadd.f32 %v24, %v25
    %27 = vst [vmem:[#allocation5] sm:$0x1] %v26
    // Predicated region
    $region14: #{tpu_custom_call.1} parent=1 // pred_check
      _
    $region15: #{tpu_custom_call.1} parent=1 // pred_check_branch
      %29 = sbr.rel (0) target = $region17
    $region16: #{tpu_custom_call.1} parent=1 // pred_region
      %s31 = ssub.s32 16, 16
      %32 = vsyncadd [#allocation4], %s31
      %s34 = sshll.u32 [#allocation5], 4
      %s35 = int_to_ptr.vmem [resolvable:$true] %s34
      %37 = dma.vmem_to_hbm [thread:$0]  %s35, 16, %s2, [#allocation4]
    $region17: #{tpu_custom_call.1} parent=1 // pred_fallthru
      _
    // Predicated region
    $region18: #{tpu_custom_call.1} parent=1 // pred_check
      _
    $region19: #{tpu_custom_call.1} parent=1 // pred_check_branch
      %39 = sbr.rel (0) target = $region21
    $region20: #{tpu_custom_call.1} parent=1 // pred_region
      %40 = dma.done [#allocation4], 16
    $region21: #{tpu_custom_call.1} parent=1 // pred_fallthru
      _
    %41 = vsyncpa [#allocation3], 1
    %42 = vsyncpa [#allocation4], 1

</llo_original>
